<compile_context>
chip_gen: v7x
topology: tpu7x:2x2x1
jax: 0.10.0
libtpu: 0.0.40
codegen_flags: <defaults>
</compile_context>

<pallas_src>
import math

import jax
import jax.numpy as jnp
from jax.experimental import pallas as pl
from jax.experimental.pallas import tpu as pltpu

LANE = 128
SUBLANE = 8
DEFAULT_TILE_M = 1024   # sweep 1024-2048 for very large batches
MIN_SPLIT_ROWS = 256    # force >=2 grid tiles once each tile still has >=256 rows (v7x 2-TC split)


def _round_up(v, m):
    return ((v + m - 1) // m) * m


def _choose_tile_m(batch, target=DEFAULT_TILE_M):
    """Pick a batch tile that (a) pads by <8 rows and (b) keeps >=2 grid tiles for moderate batches."""
    if batch <= SUBLANE:
        return SUBLANE
    n_tiles = -(-batch // target)
    # v7x: with grid=(1,) the "parallel" batch axis cannot be split across both TensorCores.
    if n_tiles < 2 and batch >= 2 * MIN_SPLIT_ROWS:
        n_tiles = 2
    return _round_up(-(-batch // n_tiles), SUBLANE)


# ----------------------------------------------------------------------------- kernel
def dqn_kernel(x_ref, w1_ref, wmid_ref, w5_ref, b_ref, o_ref):
    """Fused 5-layer MLP for one batch tile.

    x_ref   : [tile_m, in_size]        bf16  (narrow input, K-small matmul)
    w1_ref  : [in_size, 128]           bf16  (resident)
    wmid_ref: [3, 128, 128]            bf16  (resident, layers 2-4 stacked)
    w5_ref  : [128, output_size]       bf16  (resident, narrow output)
    b_ref   : [5, 128]                 f32   (resident bias pack)
    o_ref   : [tile_m, output_size]    f32
    """
    # Layer 1: bf16 MXU matmul, f32 accumulate, bias + ReLU in f32, re-pack to bf16.
    acc = jnp.dot(x_ref[...], w1_ref[...], preferred_element_type=jnp.float32)
    h = jnp.maximum(acc + b_ref[0:1, :], 0.0).astype(jnp.bfloat16)

    # Layers 2-4 (unrolled over the stacked resident weights).
    n_mid = wmid_ref.shape[0]
    for l in range(n_mid):
        acc = jnp.dot(h, wmid_ref[l], preferred_element_type=jnp.float32)
        h = jnp.maximum(acc + b_ref[l + 1:l + 2, :], 0.0).astype(jnp.bfloat16)

    # Layer 5: no activation, narrow (output_size-wide) result stored directly.
    acc = jnp.dot(h, w5_ref[...], preferred_element_type=jnp.float32)
    out_w = o_ref.shape[-1]
    b_last = b_ref[n_mid + 1:n_mid + 2, :]
    o_ref[...] = (acc + b_last[:, :out_w]).astype(o_ref.dtype)


# ----------------------------------------------------------------------------- wrapper
def dqn_forward(x, padded_params, output_size, target_tile_m=DEFAULT_TILE_M):
    """x: [batch, input_size] f32. padded_params: (w1 [in,128] bf16, wmid [3,128,128] bf16,
    w5 [128,out] bf16, bias pack [5,128] f32). Returns [batch, output_size] f32."""
    w1, w_mid, w5, b_packed = padded_params
    batch, in_size = x.shape

    tile_m = _choose_tile_m(batch, target_tile_m)
    padded_batch = _round_up(batch, tile_m)

    # bf16 at the call boundary (matmul operands are bf16 anyway); pad only batch rows.
    x_bf = x.astype(jnp.bfloat16)
    if padded_batch != batch:
        x_bf = jnp.zeros((padded_batch, in_size), jnp.bfloat16).at[:batch].set(x_bf)

    grid = (padded_batch // tile_m,)

    def resident(arr):  # same block every grid step -> DMA'd once, stays VMEM-resident
        nd = arr.ndim
        return pl.BlockSpec(arr.shape, lambda i, _nd=nd: (0,) * _nd)

    in_specs = [
        pl.BlockSpec((tile_m, in_size), lambda i: (i, 0)),   # last dim == full array dim -> legal
        resident(w1), resident(w_mid), resident(w5), resident(b_packed),
    ]
    out_specs = pl.BlockSpec((tile_m, output_size), lambda i: (i, 0))

    # Realistic cost estimate (narrow I/O, padded-feature matmul flops).
    flops = 2 * padded_batch * (in_size * LANE + w_mid.shape[0] * LANE * LANE + LANE * output_size)
    bytes_accessed = (x_bf.size * 2
                      + (w1.size + w_mid.size + w5.size) * 2
                      + b_packed.size * 4
                      + padded_batch * output_size * 4)

    out = pl.pallas_call(
        dqn_kernel,
        out_shape=jax.ShapeDtypeStruct((padded_batch, output_size), jnp.float32),
        grid=grid,
        in_specs=in_specs,
        out_specs=out_specs,
        compiler_params=pltpu.CompilerParams(
            dimension_semantics=("parallel",)),  # batch tiles shard across TCs on v7x
        cost_estimate=pl.CostEstimate(
            flops=flops, transcendentals=0, bytes_accessed=bytes_accessed),
    )(x_bf, w1, w_mid, w5, b_packed)

    return out[:batch]


# ----------------------------------------------------------------------------- params
def init_linear(key, fan_in, fan_out):
    """Mirror PyTorch nn.Linear default init (uniform +-1/sqrt(fan_in)); W stored [in, out]."""
    kw, kb = jax.random.split(key)
    bound = 1.0 / math.sqrt(fan_in)
    w = jax.random.uniform(kw, (fan_in, fan_out), jnp.float32, -bound, bound)
    b = jax.random.uniform(kb, (fan_out,), jnp.float32, -bound, bound)
    return w, b


def make_params(input_size, output_size, key):
    sizes = [(input_size, 64), (64, 128), (128, 64), (64, 32), (32, output_size)]
    keys = jax.random.split(key, len(sizes))
    return [init_linear(k, fi, fo) for k, (fi, fo) in zip(keys, sizes)]


def pad_params(params, w_dtype=jnp.bfloat16):
    """Layer 1: [in_size, 128]; layers 2-4 stacked [3,128,128]; layer 5: [128, out_size];
    biases packed [5,128] f32. Zero padding is numerically exact (zero rows/cols, relu(0)=0)."""
    (w1, b1), (w2, b2), (w3, b3), (w4, b4), (w5, b5) = params
    in_size = w1.shape[0]
    out_size = w5.shape[1]

    w1_p = jnp.zeros((in_size, LANE), jnp.float32).at[:, :w1.shape[1]].set(w1).astype(w_dtype)

    mids = []
    for w in (w2, w3, w4):
        fi, fo = w.shape
        mids.append(jnp.zeros((LANE, LANE), jnp.float32).at[:fi, :fo].set(w))
    w_mid = jnp.stack(mids, axis=0).astype(w_dtype)

    w5_p = jnp.zeros((LANE, out_size), jnp.float32).at[:w5.shape[0], :].set(w5).astype(w_dtype)

    b_rows = [jnp.zeros((LANE,), jnp.float32).at[:b.shape[0]].set(b)
              for b in (b1, b2, b3, b4, b5)]
    b_packed = jnp.stack(b_rows, axis=0)

    return w1_p, w_mid, w5_p, b_packed


# ----------------------------------------------------------------------------- reference
def reference_forward(x, params, bf16_operands=True):
    """Plain-JAX reference matching kernel numerics (bf16 operands, f32 accumulate)."""
    h = x.astype(jnp.bfloat16) if bf16_operands else x
    for i, (w, b) in enumerate(params):
        if bf16_operands:
            acc = jnp.dot(h, w.astype(jnp.bfloat16), preferred_element_type=jnp.float32)
        else:
            acc = h @ w
        acc = acc + b
        if i < len(params) - 1:
            h = jnp.maximum(acc, 0.0)
            if bf16_operands:
                h = h.astype(jnp.bfloat16)
        else:
            h = acc
    return h


# ----------------------------------------------------------------------------- main
if __name__ == "__main__":
    # TODO(synk): optimizer (Adam) and save/load_model are training/IO utilities, not part of forward.
    input_size = 8     # state-vector size for the task-offloading env
    output_size = 4    # number of discrete offloading actions
    batch = 2

    key = jax.random.PRNGKey(0)
    key_x, key_p = jax.random.split(key)

    x = jax.random.normal(key_x, (batch, input_size), jnp.float32)
    params = make_params(input_size, output_size, key_p)
    padded_params = pad_params(params)

    out = dqn_forward(x, padded_params, output_size)
    out = jax.block_until_ready(out)

    ref_bf16 = reference_forward(x, params, bf16_operands=True)
    ref_f32 = reference_forward(x, params, bf16_operands=False)

    assert out.shape == (batch, output_size)
    assert jnp.allclose(out, ref_bf16, atol=1e-3, rtol=1e-3), "mismatch vs bf16-matched reference"
    # Informational: distance to the full-f32 PyTorch-equivalent forward (bf16 rounding only).
    _ = float(jnp.max(jnp.abs(out - ref_f32)))

    print("KERNEL_OK")
</pallas_src>

<mosaic_0001>
module attributes {stable_mosaic.version = 11 : i64} {
  func.func @dqn_kernel(%arg0: i32, %arg1: memref<8x8xbf16, #tpu.memory_space<vmem>>, %arg2: memref<8x128xbf16, #tpu.memory_space<vmem>>, %arg3: memref<3x128x128xbf16, #tpu.memory_space<vmem>>, %arg4: memref<128x4xbf16, #tpu.memory_space<vmem>>, %arg5: memref<5x128xf32, #tpu.memory_space<vmem>>, %arg6: memref<8x4xf32, #tpu.memory_space<vmem>>) attributes {dimension_semantics = [#tpu.dimension_semantics<parallel>], iteration_bounds = array<i64: 1>, scalar_prefetch = 0 : i64, scratch_operands = 0 : i64, tpu.core_type = #tpu.core_type<tc>, window_params = [{transform_indices = @transform_0, window_bounds = array<i64: 8, 8>}, {pipeline_mode = #tpu.pipeline_mode<synchronous>, transform_indices = @transform_1, window_bounds = array<i64: 8, 128>}, {pipeline_mode = #tpu.pipeline_mode<synchronous>, transform_indices = @transform_2, window_bounds = array<i64: 3, 128, 128>}, {pipeline_mode = #tpu.pipeline_mode<synchronous>, transform_indices = @transform_3, window_bounds = array<i64: 128, 4>}, {pipeline_mode = #tpu.pipeline_mode<synchronous>, transform_indices = @transform_4, window_bounds = array<i64: 5, 128>}, {transform_indices = @transform_5, window_bounds = array<i64: 8, 4>}]} {
    %c0 = arith.constant 0 : index
    %c0_0 = arith.constant 0 : index
    %0 = vector.load %arg1[%c0, %c0_0] : memref<8x8xbf16, #tpu.memory_space<vmem>>, vector<8x8xbf16>
    %c0_1 = arith.constant 0 : index
    %c0_2 = arith.constant 0 : index
    %1 = vector.load %arg2[%c0_1, %c0_2] : memref<8x128xbf16, #tpu.memory_space<vmem>>, vector<8x128xbf16>
    %cst = arith.constant dense<0.000000e+00> : vector<8x128xf32>
    %2 = tpu.matmul %0, %1, %cst {dimension_numbers = #tpu.dot_dimension_numbers<[1], [0], [0], [1], [0, 0, 1, 1], [], []>} : vector<8x8xbf16>, vector<8x128xbf16>, vector<8x128xf32> -> vector<8x128xf32>
    %c0_3 = arith.constant 0 : index
    %c0_4 = arith.constant 0 : index
    %3 = vector.load %arg5[%c0_3, %c0_4] : memref<5x128xf32, #tpu.memory_space<vmem>>, vector<1x128xf32>
    %4 = vector.broadcast %3 : vector<1x128xf32> to vector<8x128xf32>
    %5 = arith.addf %2, %4 : vector<8x128xf32>
    %cst_5 = arith.constant 0.000000e+00 : f32
    %6 = vector.broadcast %cst_5 : f32 to vector<8x128xf32>
    %7 = arith.maximumf %5, %6 : vector<8x128xf32>
    %8 = arith.truncf %7 : vector<8x128xf32> to vector<8x128xbf16>
    %c0_6 = arith.constant 0 : index
    %c0_7 = arith.constant 0 : index
    %c0_8 = arith.constant 0 : index
    %9 = vector.load %arg3[%c0_6, %c0_7, %c0_8] : memref<3x128x128xbf16, #tpu.memory_space<vmem>>, vector<1x128x128xbf16>
    %10 = vector.shape_cast %9 : vector<1x128x128xbf16> to vector<128x128xbf16>
    %cst_9 = arith.constant dense<0.000000e+00> : vector<8x128xf32>
    %11 = tpu.matmul %8, %10, %cst_9 {dimension_numbers = #tpu.dot_dimension_numbers<[1], [0], [0], [1], [0, 0, 1, 1], [], []>} : vector<8x128xbf16>, vector<128x128xbf16>, vector<8x128xf32> -> vector<8x128xf32>
    %c1 = arith.constant 1 : index
    %c0_10 = arith.constant 0 : index
    %12 = vector.load %arg5[%c1, %c0_10] : memref<5x128xf32, #tpu.memory_space<vmem>>, vector<1x128xf32>
    %13 = vector.broadcast %12 : vector<1x128xf32> to vector<8x128xf32>
    %14 = arith.addf %11, %13 : vector<8x128xf32>
    %cst_11 = arith.constant 0.000000e+00 : f32
    %15 = vector.broadcast %cst_11 : f32 to vector<8x128xf32>
    %16 = arith.maximumf %14, %15 : vector<8x128xf32>
    %17 = arith.truncf %16 : vector<8x128xf32> to vector<8x128xbf16>
    %c1_12 = arith.constant 1 : index
    %c0_13 = arith.constant 0 : index
    %c0_14 = arith.constant 0 : index
    %18 = vector.load %arg3[%c1_12, %c0_13, %c0_14] : memref<3x128x128xbf16, #tpu.memory_space<vmem>>, vector<1x128x128xbf16>
    %19 = vector.shape_cast %18 : vector<1x128x128xbf16> to vector<128x128xbf16>
    %cst_15 = arith.constant dense<0.000000e+00> : vector<8x128xf32>
    %20 = tpu.matmul %17, %19, %cst_15 {dimension_numbers = #tpu.dot_dimension_numbers<[1], [0], [0], [1], [0, 0, 1, 1], [], []>} : vector<8x128xbf16>, vector<128x128xbf16>, vector<8x128xf32> -> vector<8x128xf32>
    %c2 = arith.constant 2 : index
    %c0_16 = arith.constant 0 : index
    %21 = vector.load %arg5[%c2, %c0_16] : memref<5x128xf32, #tpu.memory_space<vmem>>, vector<1x128xf32>
    %22 = vector.broadcast %21 : vector<1x128xf32> to vector<8x128xf32>
    %23 = arith.addf %20, %22 : vector<8x128xf32>
    %cst_17 = arith.constant 0.000000e+00 : f32
    %24 = vector.broadcast %cst_17 : f32 to vector<8x128xf32>
    %25 = arith.maximumf %23, %24 : vector<8x128xf32>
    %26 = arith.truncf %25 : vector<8x128xf32> to vector<8x128xbf16>
    %c2_18 = arith.constant 2 : index
    %c0_19 = arith.constant 0 : index
    %c0_20 = arith.constant 0 : index
    %27 = vector.load %arg3[%c2_18, %c0_19, %c0_20] : memref<3x128x128xbf16, #tpu.memory_space<vmem>>, vector<1x128x128xbf16>
    %28 = vector.shape_cast %27 : vector<1x128x128xbf16> to vector<128x128xbf16>
    %cst_21 = arith.constant dense<0.000000e+00> : vector<8x128xf32>
    %29 = tpu.matmul %26, %28, %cst_21 {dimension_numbers = #tpu.dot_dimension_numbers<[1], [0], [0], [1], [0, 0, 1, 1], [], []>} : vector<8x128xbf16>, vector<128x128xbf16>, vector<8x128xf32> -> vector<8x128xf32>
    %c3 = arith.constant 3 : index
    %c0_22 = arith.constant 0 : index
    %30 = vector.load %arg5[%c3, %c0_22] : memref<5x128xf32, #tpu.memory_space<vmem>>, vector<1x128xf32>
    %31 = vector.broadcast %30 : vector<1x128xf32> to vector<8x128xf32>
    %32 = arith.addf %29, %31 : vector<8x128xf32>
    %cst_23 = arith.constant 0.000000e+00 : f32
    %33 = vector.broadcast %cst_23 : f32 to vector<8x128xf32>
    %34 = arith.maximumf %32, %33 : vector<8x128xf32>
    %35 = arith.truncf %34 : vector<8x128xf32> to vector<8x128xbf16>
    %c0_24 = arith.constant 0 : index
    %c0_25 = arith.constant 0 : index
    %36 = vector.load %arg4[%c0_24, %c0_25] : memref<128x4xbf16, #tpu.memory_space<vmem>>, vector<128x4xbf16>
    %cst_26 = arith.constant dense<0.000000e+00> : vector<8x4xf32>
    %37 = tpu.matmul %35, %36, %cst_26 {dimension_numbers = #tpu.dot_dimension_numbers<[1], [0], [0], [1], [0, 0, 1, 1], [], []>} : vector<8x128xbf16>, vector<128x4xbf16>, vector<8x4xf32> -> vector<8x4xf32>
    %c4 = arith.constant 4 : index
    %c0_27 = arith.constant 0 : index
    %38 = vector.load %arg5[%c4, %c0_27] : memref<5x128xf32, #tpu.memory_space<vmem>>, vector<1x128xf32>
    %39 = vector.extract_strided_slice %38 {offsets = [0, 0], sizes = [1, 4], strides = [1, 1]} : vector<1x128xf32> to vector<1x4xf32>
    %40 = vector.broadcast %39 : vector<1x4xf32> to vector<8x4xf32>
    %41 = arith.addf %37, %40 : vector<8x4xf32>
    %c0_28 = arith.constant 0 : index
    %c0_29 = arith.constant 0 : index
    %42 = vector.load %arg6[%c0_28, %c0_29] : memref<8x4xf32, #tpu.memory_space<vmem>>, vector<8x4xf32>
    tpu.vector_store %arg6[%c0_28, %c0_29], %41 {strides = array<i32>} : memref<8x4xf32, #tpu.memory_space<vmem>>, vector<8x4xf32>,
    return
  }
  func.func @transform_0(%arg0: i32) -> (i32, i32) {
    %c0_i32 = arith.constant 0 : i32
    %c0_i32_0 = arith.constant 0 : i32
    return %arg0, %c0_i32 : i32, i32
  }
  func.func @transform_1(%arg0: i32) -> (i32, i32) {
    %c0_i32 = arith.constant 0 : i32
    %c0_i32_0 = arith.constant 0 : i32
    %c0_i32_1 = arith.constant 0 : i32
    return %c0_i32, %c0_i32_0 : i32, i32
  }
  func.func @transform_2(%arg0: i32) -> (i32, i32, i32) {
    %c0_i32 = arith.constant 0 : i32
    %c0_i32_0 = arith.constant 0 : i32
    %c0_i32_1 = arith.constant 0 : i32
    %c0_i32_2 = arith.constant 0 : i32
    return %c0_i32, %c0_i32_0, %c0_i32_1 : i32, i32, i32
  }
  func.func @transform_3(%arg0: i32) -> (i32, i32) {
    %c0_i32 = arith.constant 0 : i32
    %c0_i32_0 = arith.constant 0 : i32
    %c0_i32_1 = arith.constant 0 : i32
    return %c0_i32, %c0_i32_0 : i32, i32
  }
  func.func @transform_4(%arg0: i32) -> (i32, i32) {
    %c0_i32 = arith.constant 0 : i32
    %c0_i32_0 = arith.constant 0 : i32
    %c0_i32_1 = arith.constant 0 : i32
    return %c0_i32, %c0_i32_0 : i32, i32
  }
  func.func @transform_5(%arg0: i32) -> (i32, i32) {
    %c0_i32 = arith.constant 0 : i32
    %c0_i32_0 = arith.constant 0 : i32
    return %arg0, %c0_i32 : i32, i32
  }
}

</mosaic_0001>

<llo_original>
// kernel: tpu_custom_call.1
$region0: #{tpu_custom_call.1}
  #allocation0 [shape = 'u32[]', space=smem, size = 0x4, offset = 0x4, fixed_abs, tag = 'smem constant byte address 0x4 - core index']
  #allocation1 [shape = 'u32[144,128]{1,0:T(1,128)}', space=vmem, size = 0x12000, scoped, tag = 'internal scratch']
  %s0 = inlined_call_operand.vmem [shape: bf16[8,8], index: 0, kind: input, shape index: {}]
  %s1 = inlined_call_operand.vmem [shape: bf16[8,128], index: 1, kind: input, shape index: {}]
  %s2 = inlined_call_operand.hbm [shape: bf16[3,128,128], index: 2, kind: input, shape index: {}]
  %s3 = inlined_call_operand.vmem [shape: bf16[128,4], index: 3, kind: input, shape index: {}]
  %s4 = inlined_call_operand.vmem [shape: f32[5,128], index: 4, kind: input, shape index: {}]
  %s5 = inlined_call_operand.vmem [shape: f32[8,4], index: 5, kind: output, shape index: {}]
  %s6 = sld [smem:[#allocation0]]
  $region34: #{tpu_custom_call.1} parent=0
    _
  %s8 = ssub.s32 1, %s6
  %s9 = scalar_select 0, %s8, %s6
  $region1: #{tpu_custom_call.1} parent=0
    #allocation2 [shape = 'u8[98304]{0}', space=vmem, size = 0x18000, scoped, tag = 'input window, operand 2, single buffered']
    #allocation3 [shape = 's32[1]{0}', space=sflag, size = 0x4, scoped, tag = 'scoped memory for tpu_custom_call.1']
    %10 = vsyncpa [#allocation3], 0
    // Predicated region
    $region2: #{tpu_custom_call.1} parent=1 // pred_check
      _
    $region3: #{tpu_custom_call.1} parent=1 // pred_check_branch
      %12 = sbr.rel (0) target = $region5
    $region4: #{tpu_custom_call.1} parent=1 // pred_region
      _
    $region5: #{tpu_custom_call.1} parent=1 // pred_fallthru
      _
    // Predicated region
    $region6: #{tpu_custom_call.1} parent=1 // pred_check
      _
    $region7: #{tpu_custom_call.1} parent=1 // pred_check_branch
      %14 = sbr.rel (0) target = $region9
    $region8: #{tpu_custom_call.1} parent=1 // pred_region
      _
    $region9: #{tpu_custom_call.1} parent=1 // pred_fallthru
      _
    // Predicated region
    $region10: #{tpu_custom_call.1} parent=1 // pred_check
      _
    $region11: #{tpu_custom_call.1} parent=1 // pred_check_branch
      %16 = sbr.rel (0) target = $region13
    $region12: #{tpu_custom_call.1} parent=1 // pred_region
      %s18 = ssub.s32 3072, 3072
      %19 = vsyncadd [#allocation3], %s18
      %s20 = sshll.u32 [#allocation2], 4
      %s21 = int_to_ptr.vmem [resolvable:$true] %s20
      %26 = dma.hbm_to_vmem [thread:$0]  %s2, 3072, %s21, [#allocation3], 64, 64, 4
    $region13: #{tpu_custom_call.1} parent=1 // pred_fallthru
      _
    // Predicated region
    $region14: #{tpu_custom_call.1} parent=1 // pred_check
      _
    $region15: #{tpu_custom_call.1} parent=1 // pred_check_branch
      %28 = sbr.rel (0) target = $region17
    $region16: #{tpu_custom_call.1} parent=1 // pred_region
      _
    $region17: #{tpu_custom_call.1} parent=1 // pred_fallthru
      _
    // Predicated region
    $region18: #{tpu_custom_call.1} parent=1 // pred_check
      _
    $region19: #{tpu_custom_call.1} parent=1 // pred_check_branch
      %30 = sbr.rel (0) target = $region21
    $region20: #{tpu_custom_call.1} parent=1 // pred_region
      _
    $region21: #{tpu_custom_call.1} parent=1 // pred_fallthru
      _
    // Predicated region
    $region22: #{tpu_custom_call.1} parent=1 // pred_check
      _
    $region23: #{tpu_custom_call.1} parent=1 // pred_check_branch
      %32 = sbr.rel (0) target = $region25
    $region24: #{tpu_custom_call.1} parent=1 // pred_region
      %33 = dma.done [#allocation3], 3072
    $region25: #{tpu_custom_call.1} parent=1 // pred_fallthru
      _
    %v35 = vld [vmem:[%s0] sm:$0xf]
    %v36 = vld [vmem:[%s1] sm:$0xf]
    %v37 = vld [vmem:[%s4] sm:$0x1]
    %v38 = vlaneseq
    %v39 = vshrl.u32 %v38, 7
    %v40 = vsub.s32 0, %v39
    %v41 = vrot.slane %v37, %v40
    %vm42 = vcmask 64512
    %v44 = vsel %vm42, %v35, 0
    %vm46 = vcmask 1043456
    %v48 = vsel %vm46, %v36, 0
    %50 = vmatprep.subr.bf16.mxu0 0
    %51 = vmatpush1.bf16.msra.mxu0 %v48
    %52 = vmatprep.subr.bf16.mxu0 0
    %53 = vmatpush1.bf16.msra.mxu0 0
    %54 = vmatprep.subr.bf16.mxu0 0
    %55 = vmatpush1.bf16.msra.mxu0 0
    %56 = vmatprep.subr.bf16.mxu0 0
    %57 = vmatpush1.bf16.msra.mxu0 0
    %58 = vmatprep.subr.bf16.mxu0 0
    %59 = vmatpush1.bf16.msra.mxu0 0
    %60 = vmatprep.subr.bf16.mxu0 0
    %61 = vmatpush1.bf16.msra.mxu0 0
    %62 = vmatprep.subr.bf16.mxu0 0
    %63 = vmatpush1.bf16.msra.mxu0 0
    %64 = vmatprep.subr.bf16.mxu0 0
    %65 = vmatpush1.bf16.msra.mxu0 0
    %66 = vmatprep.subr.bf16.mxu0 0
    %67 = vmatpush1.bf16.msra.mxu0 0
    %68 = vmatprep.subr.bf16.mxu0 0
    %69 = vmatpush1.bf16.msra.mxu0 0
    %70 = vmatprep.subr.bf16.mxu0 0
    %71 = vmatpush1.bf16.msra.mxu0 0
    %72 = vmatprep.subr.bf16.mxu0 0
    %73 = vmatpush1.bf16.msra.mxu0 0
    %74 = vmatprep.subr.bf16.mxu0 0
    %75 = vmatpush1.bf16.msra.mxu0 0
    %76 = vmatprep.subr.bf16.mxu0 0
    %77 = vmatpush1.bf16.msra.mxu0 0
    %78 = vmatprep.subr.bf16.mxu0 0
    %79 = vmatpush1.bf16.msra.mxu0 0
    %80 = vmatprep.subr.bf16.mxu0 0
    %81 = vmatpush1.bf16.msra.mxu0 0
    %82 = vmatprep.mubr.bf16.mxu0 0
    %83 = vmatmul.mubr.bf16.gmra.mrb[0].mxu0 %v44
    %v84 = vpop.f32.mrb[0].mxu0
    %v85 = vadd.f32 %v41, %v84
    %v86 = vpop.f32.mrb[0].mxu0
    %v87 = vpop.f32.mrb[0].mxu0
    %v88 = vpop.f32.mrb[0].mxu0
    %89 = vdwg.mxu0
    %v90 = vmax.f32 %v85, 0.0
    %v91 = vpack.c.bf16 %v90, %v90
    %v92 = vld [vmem:[#allocation2] sm:$0xf]
    %v93 = vld [vmem:[#allocation2 + $0x4] sm:$0xf]
    %v94 = vld [vmem:[#allocation2 + $0x8] sm:$0xf]
    %v95 = vld [vmem:[#allocation2 + $0xc] sm:$0xf]
    %v96 = vld [vmem:[#allocation2 + $0x10] sm:$0xf]
    %v97 = vld [vmem:[#allocation2 + $0x14] sm:$0xf]
    %v98 = vld [vmem:[#allocation2 + $0x18] sm:$0xf]
    %v99 = vld [vmem:[#allocation2 + $0x1c] sm:$0xf]
    %v100 = vld [vmem:[#allocation2 + $0x20] sm:$0xf]
    %v101 = vld [vmem:[#allocation2 + $0x24] sm:$0xf]
    %v102 = vld [vmem:[#allocation2 + $0x28] sm:$0xf]
    %v103 = vld [vmem:[#allocation2 + $0x2c] sm:$0xf]
    %v104 = vld [vmem:[#allocation2 + $0x30] sm:$0xf]
    %v105 = vld [vmem:[#allocation2 + $0x34] sm:$0xf]
    %v106 = vld [vmem:[#allocation2 + $0x38] sm:$0xf]
    %v107 = vld [vmem:[#allocation2 + $0x3c] sm:$0xf]
    %v108 = vld [vmem:[%s4 + $0x1] sm:$0x1]
    %v109 = vlaneseq
    %v110 = vshrl.u32 %v109, 7
    %v111 = vsub.s32 0, %v110
    %v112 = vrot.slane %v108, %v111
    %v129 = vunpack.c.l.b16 %v92
    %v130 = vunpack.c.l.b16 %v93
    %v131 = vunpack.c.l.b16 %v94
    %v132 = vunpack.c.l.b16 %v95
    %v133 = vunpack.c.l.b16 %v96
    %v134 = vunpack.c.l.b16 %v97
    %v135 = vunpack.c.l.b16 %v98
    %v136 = vunpack.c.l.b16 %v99
    %v137 = vunpack.c.l.b16 %v100
    %v138 = vunpack.c.l.b16 %v101
    %v139 = vunpack.c.l.b16 %v102
    %v140 = vunpack.c.l.b16 %v103
    %v141 = vunpack.c.l.b16 %v104
    %v142 = vunpack.c.l.b16 %v105
    %v143 = vunpack.c.l.b16 %v106
    %v144 = vunpack.c.l.b16 %v107
    %v145 = vpack.c.b16 %v130, %v129
    %v146 = vpack.c.b16 %v132, %v131
    %v147 = vpack.c.b16 %v134, %v133
    %v148 = vpack.c.b16 %v136, %v135
    %v149 = vpack.c.b16 %v138, %v137
    %v150 = vpack.c.b16 %v140, %v139
    %v151 = vpack.c.b16 %v142, %v141
    %v152 = vpack.c.b16 %v144, %v143
    %161 = vmatprep.subr.bf16.mxu0 0
    %162 = vmatpush1.bf16.msra.mxu0 %v145
    %163 = vmatprep.subr.bf16.mxu0 0
    %164 = vmatpush1.bf16.msra.mxu0 %v146
    %165 = vmatprep.subr.bf16.mxu0 0
    %166 = vmatpush1.bf16.msra.mxu0 %v147
    %167 = vmatprep.subr.bf16.mxu0 0
    %168 = vmatpush1.bf16.msra.mxu0 %v148
    %169 = vmatprep.subr.bf16.mxu0 0
    %170 = vmatpush1.bf16.msra.mxu0 %v149
    %171 = vmatprep.subr.bf16.mxu0 0
    %172 = vmatpush1.bf16.msra.mxu0 %v150
    %173 = vmatprep.subr.bf16.mxu0 0
    %174 = vmatpush1.bf16.msra.mxu0 %v151
    %175 = vmatprep.subr.bf16.mxu0 0
    %176 = vmatpush1.bf16.msra.mxu0 %v152
    %177 = vmatprep.subr.bf16.mxu0 0
    %178 = vmatpush1.bf16.msra.mxu0 0
    %179 = vmatprep.subr.bf16.mxu0 0
    %180 = vmatpush1.bf16.msra.mxu0 0
    %181 = vmatprep.subr.bf16.mxu0 0
    %182 = vmatpush1.bf16.msra.mxu0 0
    %183 = vmatprep.subr.bf16.mxu0 0
    %184 = vmatpush1.bf16.msra.mxu0 0
    %185 = vmatprep.subr.bf16.mxu0 0
    %186 = vmatpush1.bf16.msra.mxu0 0
    %187 = vmatprep.subr.bf16.mxu0 0
    %188 = vmatpush1.bf16.msra.mxu0 0
    %189 = vmatprep.subr.bf16.mxu0 0
    %190 = vmatpush1.bf16.msra.mxu0 0
    %191 = vmatprep.subr.bf16.mxu0 0
    %192 = vmatpush1.bf16.msra.mxu0 0
    %193 = vmatprep.mubr.bf16.mxu0 0
    %194 = vmatmul.mubr.bf16.gmra.mrb[0].mxu0 %v91
    %v195 = vpop.f32.mrb[0].mxu0
    %v196 = vadd.f32 %v112, %v195
    %v197 = vpop.f32.mrb[0].mxu0
    %v198 = vpop.f32.mrb[0].mxu0
    %v199 = vpop.f32.mrb[0].mxu0
    %200 = vdwg.mxu0
    %v201 = vmax.f32 %v196, 0.0
    %v202 = vpack.c.bf16 %v201, %v201
    %s203 = scalar_lea.vmem [#allocation2], 64
    %v204 = vld [vmem:[%s203] sm:$0xf]
    %v205 = vld [vmem:[%s203 + $0x4] sm:$0xf]
    %v206 = vld [vmem:[%s203 + $0x8] sm:$0xf]
    %v207 = vld [vmem:[%s203 + $0xc] sm:$0xf]
    %v208 = vld [vmem:[%s203 + $0x10] sm:$0xf]
    %v209 = vld [vmem:[%s203 + $0x14] sm:$0xf]
    %v210 = vld [vmem:[%s203 + $0x18] sm:$0xf]
    %v211 = vld [vmem:[%s203 + $0x1c] sm:$0xf]
    %v212 = vld [vmem:[%s203 + $0x20] sm:$0xf]
    %v213 = vld [vmem:[%s203 + $0x24] sm:$0xf]
    %v214 = vld [vmem:[%s203 + $0x28] sm:$0xf]
    %v215 = vld [vmem:[%s203 + $0x2c] sm:$0xf]
    %v216 = vld [vmem:[%s203 + $0x30] sm:$0xf]
    %v217 = vld [vmem:[%s203 + $0x34] sm:$0xf]
    %v218 = vld [vmem:[%s203 + $0x38] sm:$0xf]
    %v219 = vld [vmem:[%s203 + $0x3c] sm:$0xf]
    %v220 = vld [vmem:[%s4 + $0x2] sm:$0x1]
    %v221 = vlaneseq
    %v222 = vshrl.u32 %v221, 7
    %v223 = vsub.s32 0, %v222
    %v224 = vrot.slane %v220, %v223
    %v241 = vunpack.c.l.b16 %v204
    %v242 = vunpack.c.l.b16 %v205
    %v243 = vunpack.c.l.b16 %v206
    %v244 = vunpack.c.l.b16 %v207
    %v245 = vunpack.c.l.b16 %v208
    %v246 = vunpack.c.l.b16 %v209
    %v247 = vunpack.c.l.b16 %v210
    %v248 = vunpack.c.l.b16 %v211
    %v249 = vunpack.c.l.b16 %v212
    %v250 = vunpack.c.l.b16 %v213
    %v251 = vunpack.c.l.b16 %v214
    %v252 = vunpack.c.l.b16 %v215
    %v253 = vunpack.c.l.b16 %v216
    %v254 = vunpack.c.l.b16 %v217
    %v255 = vunpack.c.l.b16 %v218
    %v256 = vunpack.c.l.b16 %v219
    %v257 = vpack.c.b16 %v242, %v241
    %v258 = vpack.c.b16 %v244, %v243
    %v259 = vpack.c.b16 %v246, %v245
    %v260 = vpack.c.b16 %v248, %v247
    %v261 = vpack.c.b16 %v250, %v249
    %v262 = vpack.c.b16 %v252, %v251
    %v263 = vpack.c.b16 %v254, %v253
    %v264 = vpack.c.b16 %v256, %v255
    %273 = vmatprep.subr.bf16.mxu0 0
    %274 = vmatpush1.bf16.msra.mxu0 %v257
    %275 = vmatprep.subr.bf16.mxu0 0
    %276 = vmatpush1.bf16.msra.mxu0 %v258
    %277 = vmatprep.subr.bf16.mxu0 0
    %278 = vmatpush1.bf16.msra.mxu0 %v259
    %279 = vmatprep.subr.bf16.mxu0 0
    %280 = vmatpush1.bf16.msra.mxu0 %v260
    %281 = vmatprep.subr.bf16.mxu0 0
    %282 = vmatpush1.bf16.msra.mxu0 %v261
    %283 = vmatprep.subr.bf16.mxu0 0
    %284 = vmatpush1.bf16.msra.mxu0 %v262
    %285 = vmatprep.subr.bf16.mxu0 0
    %286 = vmatpush1.bf16.msra.mxu0 %v263
    %287 = vmatprep.subr.bf16.mxu0 0
    %288 = vmatpush1.bf16.msra.mxu0 %v264
    %289 = vmatprep.subr.bf16.mxu0 0
    %290 = vmatpush1.bf16.msra.mxu0 0
    %291 = vmatprep.subr.bf16.mxu0 0
    %292 = vmatpush1.bf16.msra.mxu0 0
    %293 = vmatprep.subr.bf16.mxu0 0
    %294 = vmatpush1.bf16.msra.mxu0 0
    %295 = vmatprep.subr.bf16.mxu0 0
    %296 = vmatpush1.bf16.msra.mxu0 0
    %297 = vmatprep.subr.bf16.mxu0 0
    %298 = vmatpush1.bf16.msra.mxu0 0
    %299 = vmatprep.subr.bf16.mxu0 0
    %300 = vmatpush1.bf16.msra.mxu0 0
    %301 = vmatprep.subr.bf16.mxu0 0
    %302 = vmatpush1.bf16.msra.mxu0 0
    %303 = vmatprep.subr.bf16.mxu0 0
    %304 = vmatpush1.bf16.msra.mxu0 0
    %305 = vmatprep.mubr.bf16.mxu0 0
    %306 = vmatmul.mubr.bf16.gmra.mrb[0].mxu0 %v202
    %v307 = vpop.f32.mrb[0].mxu0
    %v308 = vadd.f32 %v224, %v307
    %v309 = vpop.f32.mrb[0].mxu0
    %v310 = vpop.f32.mrb[0].mxu0
    %v311 = vpop.f32.mrb[0].mxu0
    %312 = vdwg.mxu0
    %v313 = vmax.f32 %v308, 0.0
    %v314 = vpack.c.bf16 %v313, %v313
    %s315 = scalar_lea.vmem [#allocation2], 128
    %v316 = vld [vmem:[%s315] sm:$0xf]
    %v317 = vld [vmem:[%s315 + $0x4] sm:$0xf]
    %v318 = vld [vmem:[%s315 + $0x8] sm:$0xf]
    %v319 = vld [vmem:[%s315 + $0xc] sm:$0xf]
    %v320 = vld [vmem:[%s315 + $0x10] sm:$0xf]
    %v321 = vld [vmem:[%s315 + $0x14] sm:$0xf]
    %v322 = vld [vmem:[%s315 + $0x18] sm:$0xf]
    %v323 = vld [vmem:[%s315 + $0x1c] sm:$0xf]
    %v324 = vld [vmem:[%s315 + $0x20] sm:$0xf]
    %v325 = vld [vmem:[%s315 + $0x24] sm:$0xf]
    %v326 = vld [vmem:[%s315 + $0x28] sm:$0xf]
    %v327 = vld [vmem:[%s315 + $0x2c] sm:$0xf]
    %v328 = vld [vmem:[%s315 + $0x30] sm:$0xf]
    %v329 = vld [vmem:[%s315 + $0x34] sm:$0xf]
    %v330 = vld [vmem:[%s315 + $0x38] sm:$0xf]
    %v331 = vld [vmem:[%s315 + $0x3c] sm:$0xf]
    %v332 = vld [vmem:[%s4 + $0x3] sm:$0x1]
    %v333 = vlaneseq
    %v334 = vshrl.u32 %v333, 7
    %v335 = vsub.s32 0, %v334
    %v336 = vrot.slane %v332, %v335
    %v353 = vunpack.c.l.b16 %v316
    %v354 = vunpack.c.l.b16 %v317
    %v355 = vunpack.c.l.b16 %v318
    %v356 = vunpack.c.l.b16 %v319
    %v357 = vunpack.c.l.b16 %v320
    %v358 = vunpack.c.l.b16 %v321
    %v359 = vunpack.c.l.b16 %v322
    %v360 = vunpack.c.l.b16 %v323
    %v361 = vunpack.c.l.b16 %v324
    %v362 = vunpack.c.l.b16 %v325
    %v363 = vunpack.c.l.b16 %v326
    %v364 = vunpack.c.l.b16 %v327
    %v365 = vunpack.c.l.b16 %v328
    %v366 = vunpack.c.l.b16 %v329
    %v367 = vunpack.c.l.b16 %v330
    %v368 = vunpack.c.l.b16 %v331
    %v369 = vpack.c.b16 %v354, %v353
    %v370 = vpack.c.b16 %v356, %v355
    %v371 = vpack.c.b16 %v358, %v357
    %v372 = vpack.c.b16 %v360, %v359
    %v373 = vpack.c.b16 %v362, %v361
    %v374 = vpack.c.b16 %v364, %v363
    %v375 = vpack.c.b16 %v366, %v365
    %v376 = vpack.c.b16 %v368, %v367
    %385 = vmatprep.subr.bf16.mxu0 0
    %386 = vmatpush1.bf16.msra.mxu0 %v369
    %387 = vmatprep.subr.bf16.mxu0 0
    %388 = vmatpush1.bf16.msra.mxu0 %v370
    %389 = vmatprep.subr.bf16.mxu0 0
    %390 = vmatpush1.bf16.msra.mxu0 %v371
    %391 = vmatprep.subr.bf16.mxu0 0
    %392 = vmatpush1.bf16.msra.mxu0 %v372
    %393 = vmatprep.subr.bf16.mxu0 0
    %394 = vmatpush1.bf16.msra.mxu0 %v373
    %395 = vmatprep.subr.bf16.mxu0 0
    %396 = vmatpush1.bf16.msra.mxu0 %v374
    %397 = vmatprep.subr.bf16.mxu0 0
    %398 = vmatpush1.bf16.msra.mxu0 %v375
    %399 = vmatprep.subr.bf16.mxu0 0
    %400 = vmatpush1.bf16.msra.mxu0 %v376
    %401 = vmatprep.subr.bf16.mxu0 0
    %402 = vmatpush1.bf16.msra.mxu0 0
    %403 = vmatprep.subr.bf16.mxu0 0
    %404 = vmatpush1.bf16.msra.mxu0 0
    %405 = vmatprep.subr.bf16.mxu0 0
    %406 = vmatpush1.bf16.msra.mxu0 0
    %407 = vmatprep.subr.bf16.mxu0 0
    %408 = vmatpush1.bf16.msra.mxu0 0
    %409 = vmatprep.subr.bf16.mxu0 0
    %410 = vmatpush1.bf16.msra.mxu0 0
    %411 = vmatprep.subr.bf16.mxu0 0
    %412 = vmatpush1.bf16.msra.mxu0 0
    %413 = vmatprep.subr.bf16.mxu0 0
    %414 = vmatpush1.bf16.msra.mxu0 0
    %415 = vmatprep.subr.bf16.mxu0 0
    %416 = vmatpush1.bf16.msra.mxu0 0
    %417 = vmatprep.mubr.bf16.mxu0 0
    %418 = vmatmul.mubr.bf16.gmra.mrb[0].mxu0 %v314
    %v419 = vpop.f32.mrb[0].mxu0
    %v420 = vadd.f32 %v336, %v419
    %v421 = vpop.f32.mrb[0].mxu0
    %v422 = vpop.f32.mrb[0].mxu0
    %v423 = vpop.f32.mrb[0].mxu0
    %424 = vdwg.mxu0
    %v425 = vmax.f32 %v420, 0.0
    %v426 = vpack.c.bf16 %v425, %v425
    %v427 = vld [vmem:[%s3] sm:$0xf]
    %v428 = vld [vmem:[%s3 + $0x4] sm:$0xf]
    %v429 = vld [vmem:[%s3 + $0x8] sm:$0xf]
    %v430 = vld [vmem:[%s3 + $0xc] sm:$0xf]
    %v431 = vld [vmem:[%s3 + $0x10] sm:$0xf]
    %v432 = vld [vmem:[%s3 + $0x14] sm:$0xf]
    %v433 = vld [vmem:[%s3 + $0x18] sm:$0xf]
    %v434 = vld [vmem:[%s3 + $0x1c] sm:$0xf]
    %v435 = vld [vmem:[%s3 + $0x20] sm:$0xf]
    %v436 = vld [vmem:[%s3 + $0x24] sm:$0xf]
    %v437 = vld [vmem:[%s3 + $0x28] sm:$0xf]
    %v438 = vld [vmem:[%s3 + $0x2c] sm:$0xf]
    %v439 = vld [vmem:[%s3 + $0x30] sm:$0xf]
    %v440 = vld [vmem:[%s3 + $0x34] sm:$0xf]
    %v441 = vld [vmem:[%s3 + $0x38] sm:$0xf]
    %v442 = vld [vmem:[%s3 + $0x3c] sm:$0xf]
    %v443 = vld [vmem:[%s4 + $0x4] sm:$0x1]
    %v444 = vlaneseq
    %v445 = vshrl.u32 %v444, 7
    %v446 = vsub.s32 0, %v445
    %v447 = vrot.slane %v443, %v446
    %v464 = vunpack.c.l.b16 %v427
    %v465 = vunpack.c.l.b16 %v428
    %v466 = vunpack.c.l.b16 %v429
    %v467 = vunpack.c.l.b16 %v430
    %v468 = vunpack.c.l.b16 %v431
    %v469 = vunpack.c.l.b16 %v432
    %v470 = vunpack.c.l.b16 %v433
    %v471 = vunpack.c.l.b16 %v434
    %v472 = vunpack.c.l.b16 %v435
    %v473 = vunpack.c.l.b16 %v436
    %v474 = vunpack.c.l.b16 %v437
    %v475 = vunpack.c.l.b16 %v438
    %v476 = vunpack.c.l.b16 %v439
    %v477 = vunpack.c.l.b16 %v440
    %v478 = vunpack.c.l.b16 %v441
    %v479 = vunpack.c.l.b16 %v442
    %v480 = vpack.c.b16 %v465, %v464
    %v481 = vpack.c.b16 %v467, %v466
    %v482 = vpack.c.b16 %v469, %v468
    %v483 = vpack.c.b16 %v471, %v470
    %v484 = vpack.c.b16 %v473, %v472
    %v485 = vpack.c.b16 %v475, %v474
    %v486 = vpack.c.b16 %v477, %v476
    %v487 = vpack.c.b16 %v479, %v478
    %496 = vmatprep.subr.bf16.mxu0 0
    %497 = vmatpush1.bf16.msra.mxu0 %v480
    %498 = vmatprep.subr.bf16.mxu0 0
    %499 = vmatpush1.bf16.msra.mxu0 %v481
    %500 = vmatprep.subr.bf16.mxu0 0
    %501 = vmatpush1.bf16.msra.mxu0 %v482
    %502 = vmatprep.subr.bf16.mxu0 0
    %503 = vmatpush1.bf16.msra.mxu0 %v483
    %504 = vmatprep.subr.bf16.mxu0 0
    %505 = vmatpush1.bf16.msra.mxu0 %v484
    %506 = vmatprep.subr.bf16.mxu0 0
    %507 = vmatpush1.bf16.msra.mxu0 %v485
    %508 = vmatprep.subr.bf16.mxu0 0
    %509 = vmatpush1.bf16.msra.mxu0 %v486
    %510 = vmatprep.subr.bf16.mxu0 0
    %511 = vmatpush1.bf16.msra.mxu0 %v487
    %512 = vmatprep.subr.bf16.mxu0 0
    %513 = vmatpush1.bf16.msra.mxu0 0
    %514 = vmatprep.subr.bf16.mxu0 0
    %515 = vmatpush1.bf16.msra.mxu0 0
    %516 = vmatprep.subr.bf16.mxu0 0
    %517 = vmatpush1.bf16.msra.mxu0 0
    %518 = vmatprep.subr.bf16.mxu0 0
    %519 = vmatpush1.bf16.msra.mxu0 0
    %520 = vmatprep.subr.bf16.mxu0 0
    %521 = vmatpush1.bf16.msra.mxu0 0
    %522 = vmatprep.subr.bf16.mxu0 0
    %523 = vmatpush1.bf16.msra.mxu0 0
    %524 = vmatprep.subr.bf16.mxu0 0
    %525 = vmatpush1.bf16.msra.mxu0 0
    %526 = vmatprep.subr.bf16.mxu0 0
    %527 = vmatpush1.bf16.msra.mxu0 0
    %528 = vmatprep.mubr.bf16.mxu0 0
    %529 = vmatmul.mubr.bf16.gmra.mrb[0].mxu0 %v426
    %v530 = vpop.f32.mrb[0].mxu0
    %v531 = vadd.f32 %v447, %v530
    %v532 = vpop.f32.mrb[0].mxu0
    %v533 = vpop.f32.mrb[0].mxu0
    %v534 = vpop.f32.mrb[0].mxu0
    %535 = vdwg.mxu0
    %vm536 = vcmask 31744
    %537 = vst.msk [vmem:[%s5] sm:$0xff] %vm536, %v531
    // Predicated region
    $region26: #{tpu_custom_call.1} parent=1 // pred_check
      _
    $region27: #{tpu_custom_call.1} parent=1 // pred_check_branch
      %539 = sbr.rel (0) target = $region29
    $region28: #{tpu_custom_call.1} parent=1 // pred_region
      _
    $region29: #{tpu_custom_call.1} parent=1 // pred_fallthru
      _
    // Predicated region
    $region30: #{tpu_custom_call.1} parent=1 // pred_check
      _
    $region31: #{tpu_custom_call.1} parent=1 // pred_check_branch
      %541 = sbr.rel (0) target = $region33
    $region32: #{tpu_custom_call.1} parent=1 // pred_region
      _
    $region33: #{tpu_custom_call.1} parent=1 // pred_fallthru
      _
    %542 = vsyncpa [#allocation3], 1

</llo_original>
